<compile_context>
chip_gen: v5e
topology: v5e:2x2
jax: 0.10.0
libtpu: 0.0.40
codegen_flags: <defaults>
</compile_context>

<pallas_src>
import functools

import jax
import jax.numpy as jnp
import numpy as np
from jax.experimental import pallas as pl
from jax.experimental.pallas import tpu as pltpu


# ----------------------------- Pallas kernel -------------------------------
def _mlp_kernel(*refs, n_layers, distribution):
    """Fully fused MLP: x -> [Linear(+ReLU)]* -> Linear (+Softmax).

    refs = (x_ref, w0_ref, b0_ref, w1_ref, b1_ref, ..., o_ref)
      x_ref:  [tile_b, D_in]
      wl_ref: [D_l_in, D_l_out]   (pre-transposed)
      bl_ref: [1, D_l_out]
      o_ref:  [tile_b, D_out]
    All intermediates stay in vregs; only o_ref is written back.
    """
    x_ref = refs[0]
    o_ref = refs[-1]

    h = x_ref[...]
    for l in range(n_layers):
        w_ref = refs[1 + 2 * l]
        b_ref = refs[2 + 2 * l]
        y = jnp.dot(h, w_ref[...], preferred_element_type=jnp.float32)
        y = y + b_ref[...]
        is_last = l == n_layers - 1
        if not is_last:
            h = jnp.maximum(y, 0.0)                     # ReLU (VPU)
        elif distribution:
            # Numerically stable softmax over the lane (feature) axis.
            m = jnp.max(y, axis=-1, keepdims=True)
            e = jnp.exp(y - m)                          # EUP
            s = jnp.sum(e, axis=-1, keepdims=True)
            h = e / s                                   # exact divide; DMA-bound anyway
        else:
            h = y
    o_ref[...] = h.astype(o_ref.dtype)


# ------------------------------ wrapper -------------------------------------
def _round_up(x, m):
    return ((x + m - 1) // m) * m


def _pick_batch_tile(B):
    """Batch tile: <= 1024 rows, multiple of 8, >= 2 grid steps when B >= 16."""
    if B < 16:
        # Tiny batch: single full-array block (block dim == array dim is legal).
        return B
    half = pl.cdiv(B, 2)            # guarantee at least 2 grid steps
    return min(1024, _round_up(half, 8))


def _fused_mlp(x, params_t, distribution):
    """One pallas_call for the whole MLP.

    params_t: list of (w_t [in,out], b [1,out]) in layer order.
    """
    B, D_in = x.shape
    D_out = params_t[-1][0].shape[1]
    n_layers = len(params_t)

    tile_b = _pick_batch_tile(B)
    grid_b = pl.cdiv(B, tile_b)
    B_pad = grid_b * tile_b
    if B_pad != B:
        # Pad the batch so every grid step gets a full (tile_b, D_in) block;
        # pad rows compute harmless values and are sliced off below.
        x = jnp.pad(x, ((0, B_pad - B), (0, 0)))

    in_specs = [pl.BlockSpec((tile_b, D_in), lambda i: (i, 0))]
    operands = [x]
    for w_t, b in params_t:
        # Weights / biases stay resident across the batch grid (block idx (0,0)).
        in_specs.append(pl.BlockSpec(w_t.shape, lambda i: (0, 0)))
        in_specs.append(pl.BlockSpec(b.shape, lambda i: (0, 0)))
        operands.append(w_t)
        operands.append(b)

    kernel = functools.partial(
        _mlp_kernel, n_layers=n_layers, distribution=distribution
    )
    out = pl.pallas_call(
        kernel,
        out_shape=jax.ShapeDtypeStruct((B_pad, D_out), x.dtype),
        grid=(grid_b,),
        in_specs=in_specs,
        out_specs=pl.BlockSpec((tile_b, D_out), lambda i: (i, 0)),
        compiler_params=pltpu.CompilerParams(
            # Batch axis is independent -> shard across TensorCores on v7x.
            dimension_semantics=("parallel",),
        ),
    )(*operands)
    if B_pad != B:
        out = out[:B]
    return out


# JIT'd entry point: `distribution` is a Python bool -> static.
_fused_mlp_jit = jax.jit(_fused_mlp, static_argnames=("distribution",))


# ------------------------------- NN module ----------------------------------
class NN:
    """JAX/Pallas port of the PyTorch boilerplate MLP.

    layers: list of layer widths, e.g. [1024, 32, 16, 8]
    distribution: append Softmax over the last dim
    flatten_input: flatten everything but the batch dim before the MLP
    """

    def __init__(self, layers, embedding=False, distribution=False,
                 flatten_input=False, key=None):
        self.flatten_input = flatten_input
        self.distribution = distribution
        self.layers = layers
        if key is None:
            key = jax.random.PRNGKey(0)
        # Params kept both in torch layout (for the reference) and in the
        # kernel-friendly pre-transposed layout (hoisted out of __call__).
        self.params = []      # (w [out,in], b [out])      -- reference layout
        self.params_t = []    # (w_t [in,out], b [1,out])  -- kernel layout
        for idx in range(len(layers) - 1):
            fan_in, fan_out = layers[idx], layers[idx + 1]
            key, kw, kb = jax.random.split(key, 3)
            bound = 1.0 / np.sqrt(fan_in)
            # torch.nn.Linear default init: U(-1/sqrt(fan_in), 1/sqrt(fan_in))
            w = jax.random.uniform(kw, (fan_out, fan_in), jnp.float32, -bound, bound)
            b = jax.random.uniform(kb, (fan_out,), jnp.float32, -bound, bound)
            self.params.append((w, b))
            self.params_t.append(
                (jnp.asarray(w.T), b.reshape(1, fan_out))
            )

    def __call__(self, x):
        if self.flatten_input:
            x = x.reshape(x.shape[0], -1)
        return _fused_mlp_jit(x, self.params_t, distribution=self.distribution)


# ------------------------------ reference -----------------------------------
def _ref_forward(model, x):
    if model.flatten_input:
        x = x.reshape(x.shape[0], -1)
    n = len(model.params)
    for idx, (w, b) in enumerate(model.params):
        x = x @ w.T + b
        if idx != n - 1:
            x = jnp.maximum(x, 0.0)
        elif model.distribution:
            x = jax.nn.softmax(x, axis=-1)
    return x


if __name__ == "__main__":
    key = jax.random.PRNGKey(0)
    k_x, k_p = jax.random.split(key)

    # Input consistent with flatten_input=True: NCHW image batch [2, 4, 16, 16]
    x = jax.random.normal(k_x, (2, 4, 16, 16), jnp.float32)

    layers = [4 * 16 * 16, 32, 16, 8]
    model = NN(layers, distribution=True, flatten_input=True, key=k_p)

    out = model(x)
    out = jax.block_until_ready(out)

    ref = _ref_forward(model, x)
    np.testing.assert_allclose(np.asarray(out), np.asarray(ref), rtol=1e-5, atol=1e-5)
    assert out.shape == (2, 8)

    print("KERNEL_OK")
</pallas_src>

<mosaic_0001>
module attributes {stable_mosaic.version = 11 : i64} {
  func.func @_mlp_kernel(%arg0: i32, %arg1: memref<2x1024xf32, #tpu.memory_space<vmem>>, %arg2: memref<1024x32xf32, #tpu.memory_space<vmem>>, %arg3: memref<1x32xf32, #tpu.memory_space<vmem>>, %arg4: memref<32x16xf32, #tpu.memory_space<vmem>>, %arg5: memref<1x16xf32, #tpu.memory_space<vmem>>, %arg6: memref<16x8xf32, #tpu.memory_space<vmem>>, %arg7: memref<1x8xf32, #tpu.memory_space<vmem>>, %arg8: memref<2x8xf32, #tpu.memory_space<vmem>>) attributes {dimension_semantics = [#tpu.dimension_semantics<parallel>], iteration_bounds = array<i64: 1>, scalar_prefetch = 0 : i64, scratch_operands = 0 : i64, tpu.core_type = #tpu.core_type<tc>, window_params = [{transform_indices = @transform_0, window_bounds = array<i64: 2, 1024>}, {pipeline_mode = #tpu.pipeline_mode<synchronous>, transform_indices = @transform_1, window_bounds = array<i64: 1024, 32>}, {pipeline_mode = #tpu.pipeline_mode<synchronous>, transform_indices = @transform_2, window_bounds = array<i64: 1, 32>}, {pipeline_mode = #tpu.pipeline_mode<synchronous>, transform_indices = @transform_3, window_bounds = array<i64: 32, 16>}, {pipeline_mode = #tpu.pipeline_mode<synchronous>, transform_indices = @transform_4, window_bounds = array<i64: 1, 16>}, {pipeline_mode = #tpu.pipeline_mode<synchronous>, transform_indices = @transform_5, window_bounds = array<i64: 16, 8>}, {pipeline_mode = #tpu.pipeline_mode<synchronous>, transform_indices = @transform_6, window_bounds = array<i64: 1, 8>}, {transform_indices = @transform_7, window_bounds = array<i64: 2, 8>}]} {
    %c0 = arith.constant 0 : index
    %c0_0 = arith.constant 0 : index
    %0 = vector.load %arg1[%c0, %c0_0] : memref<2x1024xf32, #tpu.memory_space<vmem>>, vector<2x1024xf32>
    %c0_1 = arith.constant 0 : index
    %c0_2 = arith.constant 0 : index
    %1 = vector.load %arg2[%c0_1, %c0_2] : memref<1024x32xf32, #tpu.memory_space<vmem>>, vector<1024x32xf32>
    %cst = arith.constant dense<0.000000e+00> : vector<2x32xf32>
    %2 = tpu.matmul %0, %1, %cst {dimension_numbers = #tpu.dot_dimension_numbers<[1], [0], [0], [1], [0, 0, 1, 1], [], []>} : vector<2x1024xf32>, vector<1024x32xf32>, vector<2x32xf32> -> vector<2x32xf32>
    %c0_3 = arith.constant 0 : index
    %c0_4 = arith.constant 0 : index
    %3 = vector.load %arg3[%c0_3, %c0_4] : memref<1x32xf32, #tpu.memory_space<vmem>>, vector<1x32xf32>
    %4 = vector.broadcast %3 : vector<1x32xf32> to vector<2x32xf32>
    %5 = arith.addf %2, %4 : vector<2x32xf32>
    %cst_5 = arith.constant 0.000000e+00 : f32
    %6 = vector.broadcast %cst_5 : f32 to vector<2x32xf32>
    %7 = arith.maximumf %5, %6 : vector<2x32xf32>
    %c0_6 = arith.constant 0 : index
    %c0_7 = arith.constant 0 : index
    %8 = vector.load %arg4[%c0_6, %c0_7] : memref<32x16xf32, #tpu.memory_space<vmem>>, vector<32x16xf32>
    %cst_8 = arith.constant dense<0.000000e+00> : vector<2x16xf32>
    %9 = tpu.matmul %7, %8, %cst_8 {dimension_numbers = #tpu.dot_dimension_numbers<[1], [0], [0], [1], [0, 0, 1, 1], [], []>} : vector<2x32xf32>, vector<32x16xf32>, vector<2x16xf32> -> vector<2x16xf32>
    %c0_9 = arith.constant 0 : index
    %c0_10 = arith.constant 0 : index
    %10 = vector.load %arg5[%c0_9, %c0_10] : memref<1x16xf32, #tpu.memory_space<vmem>>, vector<1x16xf32>
    %11 = vector.broadcast %10 : vector<1x16xf32> to vector<2x16xf32>
    %12 = arith.addf %9, %11 : vector<2x16xf32>
    %cst_11 = arith.constant 0.000000e+00 : f32
    %13 = vector.broadcast %cst_11 : f32 to vector<2x16xf32>
    %14 = arith.maximumf %12, %13 : vector<2x16xf32>
    %c0_12 = arith.constant 0 : index
    %c0_13 = arith.constant 0 : index
    %15 = vector.load %arg6[%c0_12, %c0_13] : memref<16x8xf32, #tpu.memory_space<vmem>>, vector<16x8xf32>
    %cst_14 = arith.constant dense<0.000000e+00> : vector<2x8xf32>
    %16 = tpu.matmul %14, %15, %cst_14 {dimension_numbers = #tpu.dot_dimension_numbers<[1], [0], [0], [1], [0, 0, 1, 1], [], []>} : vector<2x16xf32>, vector<16x8xf32>, vector<2x8xf32> -> vector<2x8xf32>
    %c0_15 = arith.constant 0 : index
    %c0_16 = arith.constant 0 : index
    %17 = vector.load %arg7[%c0_15, %c0_16] : memref<1x8xf32, #tpu.memory_space<vmem>>, vector<1x8xf32>
    %18 = vector.broadcast %17 : vector<1x8xf32> to vector<2x8xf32>
    %19 = arith.addf %16, %18 : vector<2x8xf32>
    %cst_17 = arith.constant dense<0xFF800000> : vector<2xf32>
    %20 = vector.multi_reduction <maximumf>, %19, %cst_17 [1] : vector<2x8xf32> to vector<2xf32>
    %21 = vector.shape_cast %20 : vector<2xf32> to vector<2x1xf32>
    %22 = vector.broadcast %21 : vector<2x1xf32> to vector<2x8xf32>
    %23 = arith.subf %19, %22 : vector<2x8xf32>
    %24 = math.exp %23 : vector<2x8xf32>
    %cst_18 = arith.constant dense<0.000000e+00> : vector<2xf32>
    %25 = vector.multi_reduction <add>, %24, %cst_18 [1] : vector<2x8xf32> to vector<2xf32>
    %26 = vector.shape_cast %25 : vector<2xf32> to vector<2x1xf32>
    %27 = vector.broadcast %26 : vector<2x1xf32> to vector<2x8xf32>
    %28 = arith.divf %24, %27 : vector<2x8xf32>
    %c0_19 = arith.constant 0 : index
    %c0_20 = arith.constant 0 : index
    %29 = vector.load %arg8[%c0_19, %c0_20] : memref<2x8xf32, #tpu.memory_space<vmem>>, vector<2x8xf32>
    tpu.vector_store %arg8[%c0_19, %c0_20], %28 {strides = array<i32>} : memref<2x8xf32, #tpu.memory_space<vmem>>, vector<2x8xf32>,
    return
  }
  func.func @transform_0(%arg0: i32) -> (i32, i32) {
    %c0_i32 = arith.constant 0 : i32
    %c0_i32_0 = arith.constant 0 : i32
    return %arg0, %c0_i32 : i32, i32
  }
  func.func @transform_1(%arg0: i32) -> (i32, i32) {
    %c0_i32 = arith.constant 0 : i32
    %c0_i32_0 = arith.constant 0 : i32
    %c0_i32_1 = arith.constant 0 : i32
    return %c0_i32, %c0_i32_0 : i32, i32
  }
  func.func @transform_2(%arg0: i32) -> (i32, i32) {
    %c0_i32 = arith.constant 0 : i32
    %c0_i32_0 = arith.constant 0 : i32
    %c0_i32_1 = arith.constant 0 : i32
    return %c0_i32, %c0_i32_0 : i32, i32
  }
  func.func @transform_3(%arg0: i32) -> (i32, i32) {
    %c0_i32 = arith.constant 0 : i32
    %c0_i32_0 = arith.constant 0 : i32
    %c0_i32_1 = arith.constant 0 : i32
    return %c0_i32, %c0_i32_0 : i32, i32
  }
  func.func @transform_4(%arg0: i32) -> (i32, i32) {
    %c0_i32 = arith.constant 0 : i32
    %c0_i32_0 = arith.constant 0 : i32
    %c0_i32_1 = arith.constant 0 : i32
    return %c0_i32, %c0_i32_0 : i32, i32
  }
  func.func @transform_5(%arg0: i32) -> (i32, i32) {
    %c0_i32 = arith.constant 0 : i32
    %c0_i32_0 = arith.constant 0 : i32
    %c0_i32_1 = arith.constant 0 : i32
    return %c0_i32, %c0_i32_0 : i32, i32
  }
  func.func @transform_6(%arg0: i32) -> (i32, i32) {
    %c0_i32 = arith.constant 0 : i32
    %c0_i32_0 = arith.constant 0 : i32
    %c0_i32_1 = arith.constant 0 : i32
    return %c0_i32, %c0_i32_0 : i32, i32
  }
  func.func @transform_7(%arg0: i32) -> (i32, i32) {
    %c0_i32 = arith.constant 0 : i32
    %c0_i32_0 = arith.constant 0 : i32
    return %arg0, %c0_i32 : i32, i32
  }
}

</mosaic_0001>

<llo_original>
// kernel: _fused_mlp.1
$region0: #{_fused_mlp.1}
  #allocation0 [shape = 'u32[]', space=smem, size = 0x4, offset = 0x4, fixed_abs, tag = 'smem constant byte address 0x4 - core index']
  #allocation1 [shape = 'u32[72,128]{1,0:T(1,128)}', space=vmem, size = 0x9000, scoped, tag = 'internal scratch']
  %s0 = inlined_call_operand.vmem [shape: f32[2,1024], index: 0, kind: input, shape index: {}]
  %s1 = inlined_call_operand.vmem [shape: f32[1024,32], index: 1, kind: input, shape index: {}]
  %s2 = inlined_call_operand.vmem [shape: f32[1,32], index: 2, kind: input, shape index: {}]
  %s3 = inlined_call_operand.vmem [shape: f32[32,16], index: 3, kind: input, shape index: {}]
  %s4 = inlined_call_operand.vmem [shape: f32[1,16], index: 4, kind: input, shape index: {}]
  %s5 = inlined_call_operand.vmem [shape: f32[16,8], index: 5, kind: input, shape index: {}]
  %s6 = inlined_call_operand.vmem [shape: f32[1,8], index: 6, kind: input, shape index: {}]
  %s7 = inlined_call_operand.hbm [shape: f32[2,8], index: 7, kind: output, shape index: {}]
  %s8 = sld [smem:[#allocation0]]
  $region38: #{_fused_mlp.1} parent=0
    _
  %s10 = ssub.s32 1, %s8
  %s11 = scalar_select 0, %s10, %s8
  $region1: #{_fused_mlp.1} parent=0
    #allocation2 [shape = 'u8[1024]{0}', space=vmem, size = 0x400, scoped, tag = 'output window, operand 0, single buffered']
    #allocation3 [shape = 's32[1]{0}', space=sflag, size = 0x4, scoped, tag = 'scoped memory for _fused_mlp.1']
    %12 = vsyncpa [#allocation3], 0
    // Predicated region
    $region2: #{_fused_mlp.1} parent=1 // pred_check
      _
    $region3: #{_fused_mlp.1} parent=1 // pred_check_branch
      %14 = sbr.rel (0) target = $region5
    $region4: #{_fused_mlp.1} parent=1 // pred_region
      _
    $region5: #{_fused_mlp.1} parent=1 // pred_fallthru
      _
    // Predicated region
    $region6: #{_fused_mlp.1} parent=1 // pred_check
      _
    $region7: #{_fused_mlp.1} parent=1 // pred_check_branch
      %16 = sbr.rel (0) target = $region9
    $region8: #{_fused_mlp.1} parent=1 // pred_region
      _
    $region9: #{_fused_mlp.1} parent=1 // pred_fallthru
      _
    // Predicated region
    $region10: #{_fused_mlp.1} parent=1 // pred_check
      _
    $region11: #{_fused_mlp.1} parent=1 // pred_check_branch
      %18 = sbr.rel (0) target = $region13
    $region12: #{_fused_mlp.1} parent=1 // pred_region
      _
    $region13: #{_fused_mlp.1} parent=1 // pred_fallthru
      _
    // Predicated region
    $region14: #{_fused_mlp.1} parent=1 // pred_check
      _
    $region15: #{_fused_mlp.1} parent=1 // pred_check_branch
      %20 = sbr.rel (0) target = $region17
    $region16: #{_fused_mlp.1} parent=1 // pred_region
      _
    $region17: #{_fused_mlp.1} parent=1 // pred_fallthru
      _
    // Predicated region
    $region18: #{_fused_mlp.1} parent=1 // pred_check
      _
    $region19: #{_fused_mlp.1} parent=1 // pred_check_branch
      %22 = sbr.rel (0) target = $region21
    $region20: #{_fused_mlp.1} parent=1 // pred_region
      _
    $region21: #{_fused_mlp.1} parent=1 // pred_fallthru
      _
    // Predicated region
    $region22: #{_fused_mlp.1} parent=1 // pred_check
      _
    $region23: #{_fused_mlp.1} parent=1 // pred_check_branch
      %24 = sbr.rel (0) target = $region25
    $region24: #{_fused_mlp.1} parent=1 // pred_region
      _
    $region25: #{_fused_mlp.1} parent=1 // pred_fallthru
      _
    // Predicated region
    $region26: #{_fused_mlp.1} parent=1 // pred_check
      _
    $region27: #{_fused_mlp.1} parent=1 // pred_check_branch
      %26 = sbr.rel (0) target = $region29
    $region28: #{_fused_mlp.1} parent=1 // pred_region
      _
    $region29: #{_fused_mlp.1} parent=1 // pred_fallthru
      _
    %v27 = vld [vmem:[%s0] sm:$0xff]
    %v28 = vld [vmem:[%s0 + $0x8] sm:$0xff]
    %v29 = vld [vmem:[%s1] sm:$0xff]
    %v30 = vld [vmem:[%s1 + $0x8] sm:$0xff]
    %v31 = vld [vmem:[%s1 + $0x10] sm:$0xff]
    %v32 = vld [vmem:[%s1 + $0x18] sm:$0xff]
    %v33 = vld [vmem:[%s1 + $0x20] sm:$0xff]
    %v34 = vld [vmem:[%s1 + $0x28] sm:$0xff]
    %v35 = vld [vmem:[%s1 + $0x30] sm:$0xff]
    %v36 = vld [vmem:[%s1 + $0x38] sm:$0xff]
    %v37 = vld [vmem:[%s1 + $0x40] sm:$0xff]
    %v38 = vld [vmem:[%s1 + $0x48] sm:$0xff]
    %v39 = vld [vmem:[%s1 + $0x50] sm:$0xff]
    %v40 = vld [vmem:[%s1 + $0x58] sm:$0xff]
    %v41 = vld [vmem:[%s1 + $0x60] sm:$0xff]
    %v42 = vld [vmem:[%s1 + $0x68] sm:$0xff]
    %v43 = vld [vmem:[%s1 + $0x70] sm:$0xff]
    %v44 = vld [vmem:[%s1 + $0x78] sm:$0xff]
    %v45 = vld [vmem:[%s1 + $0x80] sm:$0xff]
    %v46 = vld [vmem:[%s1 + $0x88] sm:$0xff]
    %v47 = vld [vmem:[%s1 + $0x90] sm:$0xff]
    %v48 = vld [vmem:[%s1 + $0x98] sm:$0xff]
    %v49 = vld [vmem:[%s1 + $0xa0] sm:$0xff]
    %v50 = vld [vmem:[%s1 + $0xa8] sm:$0xff]
    %v51 = vld [vmem:[%s1 + $0xb0] sm:$0xff]
    %v52 = vld [vmem:[%s1 + $0xb8] sm:$0xff]
    %v53 = vld [vmem:[%s1 + $0xc0] sm:$0xff]
    %v54 = vld [vmem:[%s1 + $0xc8] sm:$0xff]
    %v55 = vld [vmem:[%s1 + $0xd0] sm:$0xff]
    %v56 = vld [vmem:[%s1 + $0xd8] sm:$0xff]
    %v57 = vld [vmem:[%s1 + $0xe0] sm:$0xff]
    %v58 = vld [vmem:[%s1 + $0xe8] sm:$0xff]
    %v59 = vld [vmem:[%s1 + $0xf0] sm:$0xff]
    %v60 = vld [vmem:[%s1 + $0xf8] sm:$0xff]
    %v61 = vld [vmem:[%s1 + $0x100] sm:$0xff]
    %v62 = vld [vmem:[%s1 + $0x108] sm:$0xff]
    %v63 = vld [vmem:[%s1 + $0x110] sm:$0xff]
    %v64 = vld [vmem:[%s1 + $0x118] sm:$0xff]
    %v65 = vld [vmem:[%s1 + $0x120] sm:$0xff]
    %v66 = vld [vmem:[%s1 + $0x128] sm:$0xff]
    %v67 = vld [vmem:[%s1 + $0x130] sm:$0xff]
    %v68 = vld [vmem:[%s1 + $0x138] sm:$0xff]
    %v69 = vld [vmem:[%s1 + $0x140] sm:$0xff]
    %v70 = vld [vmem:[%s1 + $0x148] sm:$0xff]
    %v71 = vld [vmem:[%s1 + $0x150] sm:$0xff]
    %v72 = vld [vmem:[%s1 + $0x158] sm:$0xff]
    %v73 = vld [vmem:[%s1 + $0x160] sm:$0xff]
    %v74 = vld [vmem:[%s1 + $0x168] sm:$0xff]
    %v75 = vld [vmem:[%s1 + $0x170] sm:$0xff]
    %v76 = vld [vmem:[%s1 + $0x178] sm:$0xff]
    %v77 = vld [vmem:[%s1 + $0x180] sm:$0xff]
    %v78 = vld [vmem:[%s1 + $0x188] sm:$0xff]
    %v79 = vld [vmem:[%s1 + $0x190] sm:$0xff]
    %v80 = vld [vmem:[%s1 + $0x198] sm:$0xff]
    %v81 = vld [vmem:[%s1 + $0x1a0] sm:$0xff]
    %v82 = vld [vmem:[%s1 + $0x1a8] sm:$0xff]
    %v83 = vld [vmem:[%s1 + $0x1b0] sm:$0xff]
    %v84 = vld [vmem:[%s1 + $0x1b8] sm:$0xff]
    %v85 = vld [vmem:[%s1 + $0x1c0] sm:$0xff]
    %v86 = vld [vmem:[%s1 + $0x1c8] sm:$0xff]
    %v87 = vld [vmem:[%s1 + $0x1d0] sm:$0xff]
    %v88 = vld [vmem:[%s1 + $0x1d8] sm:$0xff]
    %v89 = vld [vmem:[%s1 + $0x1e0] sm:$0xff]
    %v90 = vld [vmem:[%s1 + $0x1e8] sm:$0xff]
    %v91 = vld [vmem:[%s1 + $0x1f0] sm:$0xff]
    %v92 = vld [vmem:[%s1 + $0x1f8] sm:$0xff]
    %v93 = vld [vmem:[%s1 + $0x200] sm:$0xff]
    %v94 = vld [vmem:[%s1 + $0x208] sm:$0xff]
    %v95 = vld [vmem:[%s1 + $0x210] sm:$0xff]
    %v96 = vld [vmem:[%s1 + $0x218] sm:$0xff]
    %v97 = vld [vmem:[%s1 + $0x220] sm:$0xff]
    %v98 = vld [vmem:[%s1 + $0x228] sm:$0xff]
    %v99 = vld [vmem:[%s1 + $0x230] sm:$0xff]
    %v100 = vld [vmem:[%s1 + $0x238] sm:$0xff]
    %v101 = vld [vmem:[%s1 + $0x240] sm:$0xff]
    %v102 = vld [vmem:[%s1 + $0x248] sm:$0xff]
    %v103 = vld [vmem:[%s1 + $0x250] sm:$0xff]
    %v104 = vld [vmem:[%s1 + $0x258] sm:$0xff]
    %v105 = vld [vmem:[%s1 + $0x260] sm:$0xff]
    %v106 = vld [vmem:[%s1 + $0x268] sm:$0xff]
    %v107 = vld [vmem:[%s1 + $0x270] sm:$0xff]
    %v108 = vld [vmem:[%s1 + $0x278] sm:$0xff]
    %v109 = vld [vmem:[%s1 + $0x280] sm:$0xff]
    %v110 = vld [vmem:[%s1 + $0x288] sm:$0xff]
    %v111 = vld [vmem:[%s1 + $0x290] sm:$0xff]
    %v112 = vld [vmem:[%s1 + $0x298] sm:$0xff]
    %v113 = vld [vmem:[%s1 + $0x2a0] sm:$0xff]
    %v114 = vld [vmem:[%s1 + $0x2a8] sm:$0xff]
    %v115 = vld [vmem:[%s1 + $0x2b0] sm:$0xff]
    %v116 = vld [vmem:[%s1 + $0x2b8] sm:$0xff]
    %v117 = vld [vmem:[%s1 + $0x2c0] sm:$0xff]
    %v118 = vld [vmem:[%s1 + $0x2c8] sm:$0xff]
    %v119 = vld [vmem:[%s1 + $0x2d0] sm:$0xff]
    %v120 = vld [vmem:[%s1 + $0x2d8] sm:$0xff]
    %v121 = vld [vmem:[%s1 + $0x2e0] sm:$0xff]
    %v122 = vld [vmem:[%s1 + $0x2e8] sm:$0xff]
    %v123 = vld [vmem:[%s1 + $0x2f0] sm:$0xff]
    %v124 = vld [vmem:[%s1 + $0x2f8] sm:$0xff]
    %v125 = vld [vmem:[%s1 + $0x300] sm:$0xff]
    %v126 = vld [vmem:[%s1 + $0x308] sm:$0xff]
    %v127 = vld [vmem:[%s1 + $0x310] sm:$0xff]
    %v128 = vld [vmem:[%s1 + $0x318] sm:$0xff]
    %v129 = vld [vmem:[%s1 + $0x320] sm:$0xff]
    %v130 = vld [vmem:[%s1 + $0x328] sm:$0xff]
    %v131 = vld [vmem:[%s1 + $0x330] sm:$0xff]
    %v132 = vld [vmem:[%s1 + $0x338] sm:$0xff]
    %v133 = vld [vmem:[%s1 + $0x340] sm:$0xff]
    %v134 = vld [vmem:[%s1 + $0x348] sm:$0xff]
    %v135 = vld [vmem:[%s1 + $0x350] sm:$0xff]
    %v136 = vld [vmem:[%s1 + $0x358] sm:$0xff]
    %v137 = vld [vmem:[%s1 + $0x360] sm:$0xff]
    %v138 = vld [vmem:[%s1 + $0x368] sm:$0xff]
    %v139 = vld [vmem:[%s1 + $0x370] sm:$0xff]
    %v140 = vld [vmem:[%s1 + $0x378] sm:$0xff]
    %v141 = vld [vmem:[%s1 + $0x380] sm:$0xff]
    %v142 = vld [vmem:[%s1 + $0x388] sm:$0xff]
    %v143 = vld [vmem:[%s1 + $0x390] sm:$0xff]
    %v144 = vld [vmem:[%s1 + $0x398] sm:$0xff]
    %v145 = vld [vmem:[%s1 + $0x3a0] sm:$0xff]
    %v146 = vld [vmem:[%s1 + $0x3a8] sm:$0xff]
    %v147 = vld [vmem:[%s1 + $0x3b0] sm:$0xff]
    %v148 = vld [vmem:[%s1 + $0x3b8] sm:$0xff]
    %v149 = vld [vmem:[%s1 + $0x3c0] sm:$0xff]
    %v150 = vld [vmem:[%s1 + $0x3c8] sm:$0xff]
    %v151 = vld [vmem:[%s1 + $0x3d0] sm:$0xff]
    %v152 = vld [vmem:[%s1 + $0x3d8] sm:$0xff]
    %v153 = vld [vmem:[%s1 + $0x3e0] sm:$0xff]
    %v154 = vld [vmem:[%s1 + $0x3e8] sm:$0xff]
    %v155 = vld [vmem:[%s1 + $0x3f0] sm:$0xff]
    %v156 = vld [vmem:[%s1 + $0x3f8] sm:$0xff]
    %v157 = vld [vmem:[%s2] sm:$0x1]
    %v159 = vperm.slane %v157, 0
    %163 = vst [vmem:[#allocation1] ss:$4 sm:$0xff] %v27
    %s164 = scalar_lea.vmem [#allocation1], 32
    %165 = vst [vmem:[%s164] ss:$4 sm:$0xff] %v28
    %v166 = vld.sshfl [vmem:[#allocation1] sm:$0xff pattern:$0x73625140]
    %v167 = vld.sshfl [vmem:[#allocation1 + $0x8] sm:$0xff pattern:$0x73625140]
    %v168 = vld.sshfl [vmem:[#allocation1 + $0x10] sm:$0xff pattern:$0x73625140]
    %v169 = vld.sshfl [vmem:[#allocation1 + $0x18] sm:$0xff pattern:$0x73625140]
    %v170 = vld.sshfl [vmem:[#allocation1 + $0x20] sm:$0xff pattern:$0x73625140]
    %v171 = vld.sshfl [vmem:[#allocation1 + $0x28] sm:$0xff pattern:$0x73625140]
    %v172 = vld.sshfl [vmem:[#allocation1 + $0x30] sm:$0xff pattern:$0x73625140]
    %v173 = vld.sshfl [vmem:[#allocation1 + $0x38] sm:$0xff pattern:$0x73625140]
    %182 = vmatpush.msra.mxu0 %v44
    %183 = vmatpush.msra.mxu0 %v43
    %184 = vmatpush.msra.mxu0 %v42
    %185 = vmatpush.msra.mxu0 %v41
    %186 = vmatpush.msra.mxu0 %v40
    %187 = vmatpush.msra.mxu0 %v39
    %188 = vmatpush.msra.mxu0 %v38
    %189 = vmatpush.msra.mxu0 %v37
    %190 = vmatpush.msra.mxu0 %v36
    %191 = vmatpush.msra.mxu0 %v35
    %192 = vmatpush.msra.mxu0 %v34
    %193 = vmatpush.msra.mxu0 %v33
    %194 = vmatpush.msra.mxu0 %v32
    %195 = vmatpush.msra.mxu0 %v31
    %196 = vmatpush.msra.mxu0 %v30
    %197 = vmatpush.msra.mxu0 %v29
    %198 = vmatmul.f32.gmra.mxu0 %v166
    %v199 = vpop.f32.mrf.mxu0
    %v200 = vadd.f32 %v159, %v199
    %201 = vdwg.mxu0
    %202 = vmatpush.msra.mxu0 %v60
    %203 = vmatpush.msra.mxu0 %v59
    %204 = vmatpush.msra.mxu0 %v58
    %205 = vmatpush.msra.mxu0 %v57
    %206 = vmatpush.msra.mxu0 %v56
    %207 = vmatpush.msra.mxu0 %v55
    %208 = vmatpush.msra.mxu0 %v54
    %209 = vmatpush.msra.mxu0 %v53
    %210 = vmatpush.msra.mxu0 %v52
    %211 = vmatpush.msra.mxu0 %v51
    %212 = vmatpush.msra.mxu0 %v50
    %213 = vmatpush.msra.mxu0 %v49
    %214 = vmatpush.msra.mxu0 %v48
    %215 = vmatpush.msra.mxu0 %v47
    %216 = vmatpush.msra.mxu0 %v46
    %217 = vmatpush.msra.mxu0 %v45
    %218 = vmatmul.f32.gmra.mxu0 %v167
    %v219 = vpop.f32.mrf.mxu0
    %v220 = vadd.f32 %v200, %v219
    %221 = vdwg.mxu0
    %222 = vmatpush.msra.mxu0 %v76
    %223 = vmatpush.msra.mxu0 %v75
    %224 = vmatpush.msra.mxu0 %v74
    %225 = vmatpush.msra.mxu0 %v73
    %226 = vmatpush.msra.mxu0 %v72
    %227 = vmatpush.msra.mxu0 %v71
    %228 = vmatpush.msra.mxu0 %v70
    %229 = vmatpush.msra.mxu0 %v69
    %230 = vmatpush.msra.mxu0 %v68
    %231 = vmatpush.msra.mxu0 %v67
    %232 = vmatpush.msra.mxu0 %v66
    %233 = vmatpush.msra.mxu0 %v65
    %234 = vmatpush.msra.mxu0 %v64
    %235 = vmatpush.msra.mxu0 %v63
    %236 = vmatpush.msra.mxu0 %v62
    %237 = vmatpush.msra.mxu0 %v61
    %238 = vmatmul.f32.gmra.mxu0 %v168
    %v239 = vpop.f32.mrf.mxu0
    %v240 = vadd.f32 %v220, %v239
    %241 = vdwg.mxu0
    %242 = vmatpush.msra.mxu0 %v92
    %243 = vmatpush.msra.mxu0 %v91
    %244 = vmatpush.msra.mxu0 %v90
    %245 = vmatpush.msra.mxu0 %v89
    %246 = vmatpush.msra.mxu0 %v88
    %247 = vmatpush.msra.mxu0 %v87
    %248 = vmatpush.msra.mxu0 %v86
    %249 = vmatpush.msra.mxu0 %v85
    %250 = vmatpush.msra.mxu0 %v84
    %251 = vmatpush.msra.mxu0 %v83
    %252 = vmatpush.msra.mxu0 %v82
    %253 = vmatpush.msra.mxu0 %v81
    %254 = vmatpush.msra.mxu0 %v80
    %255 = vmatpush.msra.mxu0 %v79
    %256 = vmatpush.msra.mxu0 %v78
    %257 = vmatpush.msra.mxu0 %v77
    %258 = vmatmul.f32.gmra.mxu0 %v169
    %v259 = vpop.f32.mrf.mxu0
    %v260 = vadd.f32 %v240, %v259
    %261 = vdwg.mxu0
    %262 = vmatpush.msra.mxu0 %v108
    %263 = vmatpush.msra.mxu0 %v107
    %264 = vmatpush.msra.mxu0 %v106
    %265 = vmatpush.msra.mxu0 %v105
    %266 = vmatpush.msra.mxu0 %v104
    %267 = vmatpush.msra.mxu0 %v103
    %268 = vmatpush.msra.mxu0 %v102
    %269 = vmatpush.msra.mxu0 %v101
    %270 = vmatpush.msra.mxu0 %v100
    %271 = vmatpush.msra.mxu0 %v99
    %272 = vmatpush.msra.mxu0 %v98
    %273 = vmatpush.msra.mxu0 %v97
    %274 = vmatpush.msra.mxu0 %v96
    %275 = vmatpush.msra.mxu0 %v95
    %276 = vmatpush.msra.mxu0 %v94
    %277 = vmatpush.msra.mxu0 %v93
    %278 = vmatmul.f32.gmra.mxu0 %v170
    %v279 = vpop.f32.mrf.mxu0
    %v280 = vadd.f32 %v260, %v279
    %281 = vdwg.mxu0
    %282 = vmatpush.msra.mxu0 %v124
    %283 = vmatpush.msra.mxu0 %v123
    %284 = vmatpush.msra.mxu0 %v122
    %285 = vmatpush.msra.mxu0 %v121
    %286 = vmatpush.msra.mxu0 %v120
    %287 = vmatpush.msra.mxu0 %v119
    %288 = vmatpush.msra.mxu0 %v118
    %289 = vmatpush.msra.mxu0 %v117
    %290 = vmatpush.msra.mxu0 %v116
    %291 = vmatpush.msra.mxu0 %v115
    %292 = vmatpush.msra.mxu0 %v114
    %293 = vmatpush.msra.mxu0 %v113
    %294 = vmatpush.msra.mxu0 %v112
    %295 = vmatpush.msra.mxu0 %v111
    %296 = vmatpush.msra.mxu0 %v110
    %297 = vmatpush.msra.mxu0 %v109
    %298 = vmatmul.f32.gmra.mxu0 %v171
    %v299 = vpop.f32.mrf.mxu0
    %v300 = vadd.f32 %v280, %v299
    %301 = vdwg.mxu0
    %302 = vmatpush.msra.mxu0 %v140
    %303 = vmatpush.msra.mxu0 %v139
    %304 = vmatpush.msra.mxu0 %v138
    %305 = vmatpush.msra.mxu0 %v137
    %306 = vmatpush.msra.mxu0 %v136
    %307 = vmatpush.msra.mxu0 %v135
    %308 = vmatpush.msra.mxu0 %v134
    %309 = vmatpush.msra.mxu0 %v133
    %310 = vmatpush.msra.mxu0 %v132
    %311 = vmatpush.msra.mxu0 %v131
    %312 = vmatpush.msra.mxu0 %v130
    %313 = vmatpush.msra.mxu0 %v129
    %314 = vmatpush.msra.mxu0 %v128
    %315 = vmatpush.msra.mxu0 %v127
    %316 = vmatpush.msra.mxu0 %v126
    %317 = vmatpush.msra.mxu0 %v125
    %318 = vmatmul.f32.gmra.mxu0 %v172
    %v319 = vpop.f32.mrf.mxu0
    %v320 = vadd.f32 %v300, %v319
    %321 = vdwg.mxu0
    %322 = vmatpush.msra.mxu0 %v156
    %323 = vmatpush.msra.mxu0 %v155
    %324 = vmatpush.msra.mxu0 %v154
    %325 = vmatpush.msra.mxu0 %v153
    %326 = vmatpush.msra.mxu0 %v152
    %327 = vmatpush.msra.mxu0 %v151
    %328 = vmatpush.msra.mxu0 %v150
    %329 = vmatpush.msra.mxu0 %v149
    %330 = vmatpush.msra.mxu0 %v148
    %331 = vmatpush.msra.mxu0 %v147
    %332 = vmatpush.msra.mxu0 %v146
    %333 = vmatpush.msra.mxu0 %v145
    %334 = vmatpush.msra.mxu0 %v144
    %335 = vmatpush.msra.mxu0 %v143
    %336 = vmatpush.msra.mxu0 %v142
    %337 = vmatpush.msra.mxu0 %v141
    %338 = vmatmul.f32.gmra.mxu0 %v173
    %v339 = vpop.f32.mrf.mxu0
    %v340 = vadd.f32 %v320, %v339
    %341 = vdwg.mxu0
    %v342 = vmax.f32 %v340, 0.0
    %v343 = vld [vmem:[%s3] sm:$0xff]
    %v344 = vld [vmem:[%s3 + $0x8] sm:$0xff]
    %v345 = vld [vmem:[%s3 + $0x10] sm:$0xff]
    %v346 = vld [vmem:[%s3 + $0x18] sm:$0xff]
    %v347 = vld [vmem:[%s4] sm:$0x1]
    %v349 = vperm.slane %v347, 0
    %vm351 = vcmask 261120
    %v353 = vsel %vm351, %v342, 0
    %355 = vmatpush.msra.mxu0 0.0
    %356 = vmatpush.msra.mxu0 0.0
    %357 = vmatpush.msra.mxu0 0.0
    %358 = vmatpush.msra.mxu0 0.0
    %359 = vmatpush.msra.mxu0 0.0
    %360 = vmatpush.msra.mxu0 0.0
    %361 = vmatpush.msra.mxu0 0.0
    %362 = vmatpush.msra.mxu0 0.0
    %363 = vmatpush.msra.mxu0 0.0
    %364 = vmatpush.msra.mxu0 0.0
    %365 = vmatpush.msra.mxu0 0.0
    %366 = vmatpush.msra.mxu0 0.0
    %367 = vmatpush.msra.mxu0 %v346
    %368 = vmatpush.msra.mxu0 %v345
    %369 = vmatpush.msra.mxu0 %v344
    %370 = vmatpush.msra.mxu0 %v343
    %371 = vmatmul.f32.gmra.mxu0 %v353
    %v372 = vpop.f32.mrf.mxu0
    %v373 = vadd.f32 %v349, %v372
    %374 = vdwg.mxu0
    %v375 = vmax.f32 %v373, 0.0
    %v376 = vld [vmem:[%s5] sm:$0xff]
    %v377 = vld [vmem:[%s5 + $0x8] sm:$0xff]
    %v378 = vld [vmem:[%s6] sm:$0x1]
    %v380 = vperm.slane %v378, 0
    %vm382 = vcmask 130048
    %v384 = vsel %vm382, %v375, 0
    %386 = vmatpush.msra.mxu0 0.0
    %387 = vmatpush.msra.mxu0 0.0
    %388 = vmatpush.msra.mxu0 0.0
    %389 = vmatpush.msra.mxu0 0.0
    %390 = vmatpush.msra.mxu0 0.0
    %391 = vmatpush.msra.mxu0 0.0
    %392 = vmatpush.msra.mxu0 0.0
    %393 = vmatpush.msra.mxu0 0.0
    %394 = vmatpush.msra.mxu0 0.0
    %395 = vmatpush.msra.mxu0 0.0
    %396 = vmatpush.msra.mxu0 0.0
    %397 = vmatpush.msra.mxu0 0.0
    %398 = vmatpush.msra.mxu0 0.0
    %399 = vmatpush.msra.mxu0 0.0
    %400 = vmatpush.msra.mxu0 %v377
    %401 = vmatpush.msra.mxu0 %v376
    %402 = vmatmul.f32.gmra.mxu0 %v384
    %v403 = vpop.f32.mrf.mxu0
    %v404 = vadd.f32 %v380, %v403
    %405 = vdwg.mxu0
    %vm406 = vcmask 58368
    %v407 = vsel %vm406, %v404, -inf
    %408 = vmax.xlane.f32.xlu0 %v407
    %v409 = vpop.xlane.xlu0 %408
    %v410 = vsub.f32 %v404, %v409
    %v411 = vmul.f32 %v410, 1.442695
    %v412 = vpow.pop %v411
    %v413 = vsel %vm406, %v412, 0.0
    %414 = vadd.xlane.f32.xlu0 %v413
    %v415 = vpop.xlane.xlu0 %414
    %v416 = vrcp.pop %v415
    %v417 = vmul.f32 %v415, %v416
    %v418 = vsub.f32 1.0, %v417
    %v419 = vmul.f32 %v416, %v418
    %v420 = vadd.f32 %v416, %v419
    %vm421 = vweird.f32 %v415
    %vm422 = vweird.f32 %v416
    %vm423 = vmor %vm421, %vm422
    %v424 = vsel %vm423, %v416, %v420
    %v425 = vand.u32 2147483647, %v415
    %vm426 = vcmp.eq.f32.partialorder %v425, 8.507059e+37
    %v427 = vand.u32 %v415, 2147483648
    %v428 = vor.u32 1.1754944e-38, %v427
    %v429 = vsel %vm426, %v428, %v424
    %v430 = vmul.f32 %v412, %v429
    %431 = vst.msk [vmem:[#allocation2] sm:$0x3] %vm406, %v430
    // Predicated region
    $region30: #{_fused_mlp.1} parent=1 // pred_check
      _
    $region31: #{_fused_mlp.1} parent=1 // pred_check_branch
      %433 = sbr.rel (0) target = $region33
    $region32: #{_fused_mlp.1} parent=1 // pred_region
      %435 = vsyncadd [#allocation3], 0
      %s437 = sshll.u32 [#allocation2], 4
      %s438 = int_to_ptr.vmem [resolvable:$true] %s437
      %s439 = sshll.u32 %s7, 4
      %s440 = int_to_ptr.hbm [resolvable:$true] %s439
      %442 = dma.vmem_to_hbm [thread:$0]  %s438, 32, %s440, [#allocation3]
    $region33: #{_fused_mlp.1} parent=1 // pred_fallthru
      _
    // Predicated region
    $region34: #{_fused_mlp.1} parent=1 // pred_check
      _
    $region35: #{_fused_mlp.1} parent=1 // pred_check_branch
      %444 = sbr.rel (0) target = $region37
    $region36: #{_fused_mlp.1} parent=1 // pred_region
      %446 = dma.done [#allocation3], 32
    $region37: #{_fused_mlp.1} parent=1 // pred_fallthru
      _
    %447 = vsyncpa [#allocation3], 1

</llo_original>
